<compile_context>
chip_gen: v7x
topology: tpu7x:2x2x1
jax: 0.10.0
libtpu: 0.0.40
codegen_flags: <defaults>
</compile_context>

<pallas_src>
import jax
import jax.numpy as jnp
from jax.experimental import pallas as pl
from jax.experimental.pallas import tpu as pltpu


def _fully_conv_kernel(x_ref, w_ref, b_ref, out_ref):
    """1x1 Conv2d (C -> 1) on a dense batch slab.

    x_ref  : (bb, C*L) VMEM   -- row b = [x[b,0,:], x[b,1,:], ..., x[b,C-1,:]]
    w_ref  : (C,)      SMEM   -- conv weight (1, C, 1, 1) squeezed to scalars
    b_ref  : (1,)      SMEM   -- conv bias scalar
    out_ref: (bb, L)   VMEM   -- dense output slab (L = H*W)
    """
    L = out_ref.shape[-1]
    C = w_ref.shape[0]
    # Static unroll over the (tiny) channel count: C aligned lane slabs,
    # each scaled by an SMEM scalar and accumulated on the VPU.
    acc = x_ref[:, pl.ds(0, L)] * w_ref[0]
    for c in range(1, C):
        acc = acc + x_ref[:, pl.ds(c * L, L)] * w_ref[c]
    # Single bias broadcast per block, single whole-slab (lane-dense) store.
    out_ref[...] = (acc + b_ref[0]).astype(out_ref.dtype)


def fully_conv_forward(x, weight, bias, *, target_block_bytes=4 << 20):
    """x: (B, C, H, W); weight: (1, C, 1, 1); bias: (1,) -> (B, 1, H, W)."""
    B, C, H, W = x.shape
    L = H * W

    x2 = x.reshape(B, C * L)          # free reshape (contiguous): dense rows
    w = weight.reshape(C)             # C scalars -> SMEM
    b = bias.reshape(1)               # bias scalar -> SMEM

    # --- batch-tile sizing (bandwidth-bound: big dense tiles, >=4 steps) ----
    bytes_per_row = C * L * x.dtype.itemsize
    bb = int(max(1, target_block_bytes // bytes_per_row))
    bb = min(bb, B)
    if B // 4 >= 8:                   # keep >= 4 grid steps when B allows it
        bb = min(bb, B // 4)
    if bb >= 8:                       # sublane-dense (8,128) output tiles
        bb -= bb % 8
    grid = (pl.cdiv(B, bb),)
    # NOTE: when B % bb != 0 the tail step computes on Pallas-padded rows that
    # are discarded -- correct, slightly wasted work.

    out2 = pl.pallas_call(
        _fully_conv_kernel,
        out_shape=jax.ShapeDtypeStruct((B, L), x.dtype),
        grid=grid,
        in_specs=[
            pl.BlockSpec((bb, C * L), lambda i: (i, 0)),
            pl.BlockSpec(memory_space=pltpu.MemorySpace.SMEM),   # weight scalars
            pl.BlockSpec(memory_space=pltpu.MemorySpace.SMEM),   # bias scalar
        ],
        out_specs=pl.BlockSpec((bb, L), lambda i: (i, 0)),
        compiler_params=pltpu.CompilerParams(
            dimension_semantics=("parallel",),     # batch sharded across TCs
            vmem_limit_bytes=32 * 1024 * 1024,     # explicit (v5e default = 16 MiB)
        ),
    )(x2, w, b)

    return out2.reshape(B, 1, H, W)


if __name__ == "__main__":
    B, C, H, W = 2, 4, 16, 16

    key = jax.random.PRNGKey(0)
    kx, kw, kb = jax.random.split(key, 3)
    x = jax.random.normal(kx, (B, C, H, W), jnp.float32)
    weight = jax.random.normal(kw, (1, C, 1, 1), jnp.float32) * 0.1  # Conv2d(c,1,1) weight
    bias = jax.random.normal(kb, (1,), jnp.float32) * 0.1            # Conv2d(c,1,1) bias

    out = jax.block_until_ready(fully_conv_forward(x, weight, bias))

    # Pure-JAX reference for the 1x1 conv (PyTorch Conv2d(c, 1, 1) semantics).
    ref = jnp.einsum("oc,bchw->bohw", weight.reshape(1, C), x) + bias.reshape(1, 1, 1, 1)

    assert out.shape == (B, 1, H, W), out.shape
    assert jnp.all(jnp.isfinite(out))
    assert jnp.allclose(out, ref, atol=1e-5, rtol=1e-5)
    print("KERNEL_OK")
</pallas_src>

<mosaic_0001>
module attributes {stable_mosaic.version = 11 : i64} {
  func.func @_fully_conv_kernel(%arg0: i32, %arg1: memref<2x1024xf32, #tpu.memory_space<vmem>>, %arg2: memref<4xf32, #tpu.memory_space<smem>>, %arg3: memref<1xf32, #tpu.memory_space<smem>>, %arg4: memref<2x256xf32, #tpu.memory_space<vmem>>) attributes {dimension_semantics = [#tpu.dimension_semantics<parallel>], iteration_bounds = array<i64: 1>, scalar_prefetch = 0 : i64, scratch_operands = 0 : i64, tpu.core_type = #tpu.core_type<tc>, window_params = [{transform_indices = @transform_0, window_bounds = array<i64: 2, 1024>}, {transform_indices = @transform_1, window_bounds = array<i64: 4>}, {transform_indices = @transform_2, window_bounds = array<i64: 1>}, {transform_indices = @transform_3, window_bounds = array<i64: 2, 256>}]} {
    %c0 = arith.constant 0 : index
    %c0_0 = arith.constant 0 : index
    %0 = vector.load %arg1[%c0, %c0_0] : memref<2x1024xf32, #tpu.memory_space<vmem>>, vector<2x256xf32>
    %c0_1 = arith.constant 0 : index
    %1 = memref.load %arg2[%c0_1] : memref<4xf32, #tpu.memory_space<smem>>
    %2 = vector.broadcast %1 : f32 to vector<2x256xf32>
    %3 = arith.mulf %0, %2 : vector<2x256xf32>
    %c0_2 = arith.constant 0 : index
    %c256 = arith.constant 256 : index
    %4 = vector.load %arg1[%c0_2, %c256] : memref<2x1024xf32, #tpu.memory_space<vmem>>, vector<2x256xf32>
    %c1 = arith.constant 1 : index
    %5 = memref.load %arg2[%c1] : memref<4xf32, #tpu.memory_space<smem>>
    %6 = vector.broadcast %5 : f32 to vector<2x256xf32>
    %7 = arith.mulf %4, %6 : vector<2x256xf32>
    %8 = arith.addf %3, %7 : vector<2x256xf32>
    %c0_3 = arith.constant 0 : index
    %c512 = arith.constant 512 : index
    %9 = vector.load %arg1[%c0_3, %c512] : memref<2x1024xf32, #tpu.memory_space<vmem>>, vector<2x256xf32>
    %c2 = arith.constant 2 : index
    %10 = memref.load %arg2[%c2] : memref<4xf32, #tpu.memory_space<smem>>
    %11 = vector.broadcast %10 : f32 to vector<2x256xf32>
    %12 = arith.mulf %9, %11 : vector<2x256xf32>
    %13 = arith.addf %8, %12 : vector<2x256xf32>
    %c0_4 = arith.constant 0 : index
    %c768 = arith.constant 768 : index
    %14 = vector.load %arg1[%c0_4, %c768] : memref<2x1024xf32, #tpu.memory_space<vmem>>, vector<2x256xf32>
    %c3 = arith.constant 3 : index
    %15 = memref.load %arg2[%c3] : memref<4xf32, #tpu.memory_space<smem>>
    %16 = vector.broadcast %15 : f32 to vector<2x256xf32>
    %17 = arith.mulf %14, %16 : vector<2x256xf32>
    %18 = arith.addf %13, %17 : vector<2x256xf32>
    %c0_5 = arith.constant 0 : index
    %19 = memref.load %arg3[%c0_5] : memref<1xf32, #tpu.memory_space<smem>>
    %20 = vector.broadcast %19 : f32 to vector<2x256xf32>
    %21 = arith.addf %18, %20 : vector<2x256xf32>
    %c0_6 = arith.constant 0 : index
    %c0_7 = arith.constant 0 : index
    %22 = vector.load %arg4[%c0_6, %c0_7] : memref<2x256xf32, #tpu.memory_space<vmem>>, vector<2x256xf32>
    tpu.vector_store %arg4[%c0_6, %c0_7], %21 {strides = array<i32>} : memref<2x256xf32, #tpu.memory_space<vmem>>, vector<2x256xf32>,
    return
  }
  func.func @transform_0(%arg0: i32) -> (i32, i32) {
    %c0_i32 = arith.constant 0 : i32
    %c0_i32_0 = arith.constant 0 : i32
    return %arg0, %c0_i32 : i32, i32
  }
  func.func @transform_1(%arg0: i32) -> i32 {
    %c0_i32 = arith.constant 0 : i32
    %c0_i32_0 = arith.constant 0 : i32
    return %c0_i32 : i32
  }
  func.func @transform_2(%arg0: i32) -> i32 {
    %c0_i32 = arith.constant 0 : i32
    %c0_i32_0 = arith.constant 0 : i32
    return %c0_i32 : i32
  }
  func.func @transform_3(%arg0: i32) -> (i32, i32) {
    %c0_i32 = arith.constant 0 : i32
    %c0_i32_0 = arith.constant 0 : i32
    return %arg0, %c0_i32 : i32, i32
  }
}

</mosaic_0001>

<llo_original>
// kernel: tpu_custom_call.1
$region0: #{tpu_custom_call.1}
  #allocation0 [shape = 'u32[]', space=smem, size = 0x4, offset = 0x4, fixed_abs, tag = 'smem constant byte address 0x4 - core index']
  #allocation1 [shape = 'u32[144,128]{1,0:T(1,128)}', space=vmem, size = 0x12000, scoped, tag = 'internal scratch']
  #allocation2 [shape = 'f32[1]{0:T(128)S(6)}', space=smem, size = 0x200, scoped, tag = 'scoped memory for tpu_custom_call.1']
  %s0 = inlined_call_operand.hbm [shape: f32[2,1024], index: 0, kind: input, shape index: {}]
  %s1 = inlined_call_operand.vmem [shape: f32[4], index: 1, kind: input, shape index: {}]
  %s2 = inlined_call_operand.<no memory space> [shape: f32[1], index: 2, kind: input, shape index: {}]
  %s3 = inlined_call_operand.hbm [shape: f32[2,256], index: 3, kind: output, shape index: {}]
  %s4 = sld [smem:[#allocation0]]
  $region30: #{tpu_custom_call.1} parent=0
    _
  %s6 = ssub.s32 1, %s4
  %s7 = scalar_select 0, %s6, %s4
  %8 = sst [smem:[#allocation2]] %s2
  $region1: #{tpu_custom_call.1} parent=0
    #allocation3 [shape = 'u8[8192]{0}', space=vmem, size = 0x2000, scoped, tag = 'input window, operand 0, single buffered']
    #allocation4 [shape = 's32[1]{0}', space=sflag, size = 0x4, scoped, tag = 'scoped memory for tpu_custom_call.1']
    #allocation5 [shape = 's32[1]{0}', space=sflag, size = 0x4, scoped, tag = 'scoped memory for tpu_custom_call.1']
    #allocation6 [shape = 's32[1]{0}', space=sflag, size = 0x4, scoped, tag = 'scoped memory for tpu_custom_call.1']
    #allocation7 [shape = 'u8[512]{0}', space=smem, size = 0x200, scoped, tag = 'input window, operand 1, single buffered']
    #allocation8 [shape = 'u8[2048]{0}', space=vmem, size = 0x800, scoped, tag = 'output window, operand 0, single buffered']
    %9 = vsyncpa [#allocation4], 0
    %10 = vsyncpa [#allocation6], 0
    %11 = vsyncpa [#allocation5], 0
    // Predicated region
    $region2: #{tpu_custom_call.1} parent=1 // pred_check
      _
    $region3: #{tpu_custom_call.1} parent=1 // pred_check_branch
      %13 = sbr.rel (0) target = $region5
    $region4: #{tpu_custom_call.1} parent=1 // pred_region
      %s15 = ssub.s32 256, 256
      %16 = vsyncadd [#allocation4], %s15
      %s18 = sshll.u32 [#allocation3], 4
      %s19 = int_to_ptr.vmem [resolvable:$true] %s18
      %21 = dma.hbm_to_vmem [thread:$0]  %s0, 256, %s19, [#allocation4]
    $region5: #{tpu_custom_call.1} parent=1 // pred_fallthru
      _
    // Predicated region
    $region6: #{tpu_custom_call.1} parent=1 // pred_check
      _
    $region7: #{tpu_custom_call.1} parent=1 // pred_check_branch
      %23 = sbr.rel (0) target = $region9
    $region8: #{tpu_custom_call.1} parent=1 // pred_region
      %s25 = ssub.s32 16, 16
      %26 = vsyncadd [#allocation6], %s25
      %s28 = sshll.u32 %s1, 4
      %s29 = int_to_ptr.vmem [resolvable:$true] %s28
      %31 = dma.vmem_to_smem %s29, 16, [#allocation7], [#allocation6]
    $region9: #{tpu_custom_call.1} parent=1 // pred_fallthru
      _
    // Predicated region
    $region10: #{tpu_custom_call.1} parent=1 // pred_check
      _
    $region11: #{tpu_custom_call.1} parent=1 // pred_check_branch
      %33 = sbr.rel (0) target = $region13
    $region12: #{tpu_custom_call.1} parent=1 // pred_region
      _
    $region13: #{tpu_custom_call.1} parent=1 // pred_fallthru
      _
    // Predicated region
    $region14: #{tpu_custom_call.1} parent=1 // pred_check
      _
    $region15: #{tpu_custom_call.1} parent=1 // pred_check_branch
      %35 = sbr.rel (0) target = $region17
    $region16: #{tpu_custom_call.1} parent=1 // pred_region
      %36 = dma.done [#allocation4], 256
    $region17: #{tpu_custom_call.1} parent=1 // pred_fallthru
      _
    // Predicated region
    $region18: #{tpu_custom_call.1} parent=1 // pred_check
      _
    $region19: #{tpu_custom_call.1} parent=1 // pred_check_branch
      %38 = sbr.rel (0) target = $region21
    $region20: #{tpu_custom_call.1} parent=1 // pred_region
      %39 = dma.done [#allocation6], 16
    $region21: #{tpu_custom_call.1} parent=1 // pred_fallthru
      _
    %40 = sfence
    %v41 = vld [vmem:[#allocation3] sm:$0xf]
    %s42 = sld [smem:[#allocation7]]
    %v43 = vstv %s42
    %v44 = vmul.f32 %v41, %v43
    %v45 = vld [vmem:[#allocation3 + $0x4] sm:$0xf]
    %s46 = sld [smem:[#allocation7 + $0x1]]
    %v47 = vstv %s46
    %v48 = vmul.f32 %v45, %v47
    %v49 = vadd.f32 %v44, %v48
    %v50 = vld [vmem:[#allocation3 + $0x8] sm:$0xf]
    %s51 = sld [smem:[#allocation7 + $0x2]]
    %v52 = vstv %s51
    %v53 = vmul.f32 %v50, %v52
    %v54 = vadd.f32 %v49, %v53
    %v55 = vld [vmem:[#allocation3 + $0xc] sm:$0xf]
    %s56 = sld [smem:[#allocation7 + $0x3]]
    %v57 = vstv %s56
    %v58 = vmul.f32 %v55, %v57
    %v59 = vadd.f32 %v54, %v58
    %s60 = sld [smem:[#allocation2]]
    %v61 = vstv %s60
    %v62 = vadd.f32 %v59, %v61
    %63 = vst [vmem:[#allocation8] sm:$0xf] %v62
    // Predicated region
    $region22: #{tpu_custom_call.1} parent=1 // pred_check
      _
    $region23: #{tpu_custom_call.1} parent=1 // pred_check_branch
      %65 = sbr.rel (0) target = $region25
    $region24: #{tpu_custom_call.1} parent=1 // pred_region
      %s67 = ssub.s32 64, 64
      %68 = vsyncadd [#allocation5], %s67
      %s70 = sshll.u32 [#allocation8], 4
      %s71 = int_to_ptr.vmem [resolvable:$true] %s70
      %73 = dma.vmem_to_hbm [thread:$0]  %s71, 64, %s3, [#allocation5]
    $region25: #{tpu_custom_call.1} parent=1 // pred_fallthru
      _
    // Predicated region
    $region26: #{tpu_custom_call.1} parent=1 // pred_check
      _
    $region27: #{tpu_custom_call.1} parent=1 // pred_check_branch
      %75 = sbr.rel (0) target = $region29
    $region28: #{tpu_custom_call.1} parent=1 // pred_region
      %76 = dma.done [#allocation5], 64
    $region29: #{tpu_custom_call.1} parent=1 // pred_fallthru
      _
    %77 = vsyncpa [#allocation4], 1
    %78 = vsyncpa [#allocation5], 1
    %79 = vsyncpa [#allocation6], 1

</llo_original>
